<compile_context>
chip_gen: v5e
topology: v5e:2x2
jax: 0.10.0
libtpu: 0.0.40
codegen_flags: <defaults>
</compile_context>

<pallas_src>
import functools

import jax
import jax.numpy as jnp
from jax.experimental import pallas as pl
from jax.experimental.pallas import tpu as pltpu

_LANE = 128
_ROW_PACK = 16         # bf16 packs (16, 128) per vreg -> row tiles multiple of 16
_TB_MAX = 512          # max rows per grid step (amortizes ~0.35 us/step overhead)
_NEG = -1e30           # finite "-inf" for padded class columns


def _round_up(n, m):
    return ((n + m - 1) // m) * m


def _model_kernel(x_ref, w_ref, b_ref, y_ref, logits_ref, nll_ref, corr_ref):
    """network + criterion + metric for one batch tile.

    x_ref      : (TB, D)    bf16  input features (zero-padded rows)
    w_ref      : (D, Cp)    bf16  linear weight (pre-transposed), VMEM-resident
    b_ref      : (1, Cp)    f32   bias (padded classes = -1e30), VMEM-resident
    y_ref      : (TB, 1)    i32   class ids (padded rows = -1)
    logits_ref : (TB, Cp)   bf16  net_out['logits'] (lane-dense slab)
    nll_ref    : (1, 1)     f32   SMEM: per-tile sum of cross-entropy
    corr_ref   : (1, 1)     f32   SMEM: per-tile sum of top-1 correctness
    """
    x = x_ref[...]
    y = y_ref[...]                                     # (TB, 1) int32
    valid = y >= 0                                     # padded rows -> False

    # ---- network: linear layer (bf16 MXU matmul, f32 accumulate) ----
    logits = jnp.dot(x, w_ref[...], preferred_element_type=jnp.float32) + b_ref[...]
    logits_ref[...] = logits.astype(logits_ref.dtype)  # bf16 writeback; f32 kept below

    # ---- criterion: cross-entropy without materializing log-softmax ----
    m = jnp.max(logits, axis=-1, keepdims=True)        # single row-max (reused below)
    lse = jnp.log(jnp.sum(jnp.exp(logits - m), axis=-1, keepdims=True))
    cls_ids = jax.lax.broadcasted_iota(jnp.int32, logits.shape, 1)
    onehot = (cls_ids == y).astype(jnp.float32)        # pad rows (y = -1) -> all zero
    logit_y = jnp.sum(onehot * logits, axis=-1, keepdims=True)
    nll = jnp.where(valid, m + lse - logit_y, 0.0)     # (TB, 1), 0 on pad rows
    nll_ref[0, 0] = jnp.sum(nll)                       # per-tile partial sum -> SMEM

    # ---- metric: top-1 correctness (f32 logits, first-max tie-break) ----
    c_pad = logits.shape[1]
    pred = jnp.min(jnp.where(logits == m, cls_ids, c_pad), axis=-1, keepdims=True)
    corr_ref[0, 0] = jnp.sum((pred == y).astype(jnp.float32))


@functools.partial(jax.jit, static_argnames=("n_classes",))
def _fused_forward(x, y, w_pad, b_pad, *, n_classes):
    B, D = x.shape
    _, C_pad = w_pad.shape

    # Adaptive row tiling: multiples of 16 rows (bf16 sublane packing); bound the
    # last-tile waste instead of rounding B up to a full max-size tile.
    b16 = _round_up(B, _ROW_PACK)
    num_tiles = pl.cdiv(b16, _TB_MAX)
    TB = _round_up(pl.cdiv(b16, num_tiles), _ROW_PACK)
    B_pad = TB * num_tiles

    # Batch padding only (feature dim left untouched); labels of padded rows = -1
    # so they never match a class and never count as "correct".
    x_pad = jnp.pad(x.astype(jnp.bfloat16), ((0, B_pad - B), (0, 0)))
    y_pad = jnp.pad(y.astype(jnp.int32).reshape(B, 1), ((0, B_pad - B), (0, 0)),
                    constant_values=-1)

    cost = pl.CostEstimate(
        flops=2 * B_pad * D * C_pad + 8 * B_pad * C_pad,
        transcendentals=B_pad * C_pad + B_pad,
        bytes_accessed=(x_pad.size * 2 + w_pad.size * 2 + b_pad.size * 4
                        + y_pad.size * 4 + B_pad * C_pad * 2 + 8 * num_tiles),
    )

    logits_pad, nll_part, corr_part = pl.pallas_call(
        _model_kernel,
        out_shape=(
            jax.ShapeDtypeStruct((B_pad, C_pad), jnp.bfloat16),
            jax.ShapeDtypeStruct((num_tiles, 1), jnp.float32),
            jax.ShapeDtypeStruct((num_tiles, 1), jnp.float32),
        ),
        grid=(num_tiles,),
        in_specs=[
            pl.BlockSpec((TB, D), lambda i: (i, 0)),               # x tile (pipelined)
            pl.BlockSpec(memory_space=pltpu.MemorySpace.VMEM),     # W: single resident copy
            pl.BlockSpec(memory_space=pltpu.MemorySpace.VMEM),     # bias: single resident copy
            # TODO(synk): labels are a (TB,1) masked vld; move to SMEM/scalar
            # prefetch if profiling ever shows this load matters.
            pl.BlockSpec((TB, 1), lambda i: (i, 0)),               # labels tile
        ],
        out_specs=(
            pl.BlockSpec((TB, C_pad), lambda i: (i, 0)),           # bf16 logits slab
            pl.BlockSpec((1, 1), lambda i: (i, 0),
                         memory_space=pltpu.MemorySpace.SMEM),     # per-tile sum(nll)
            pl.BlockSpec((1, 1), lambda i: (i, 0),
                         memory_space=pltpu.MemorySpace.SMEM),     # per-tile sum(correct)
        ),
        compiler_params=pltpu.CompilerParams(
            # "parallel" -> batch-tile megacore sharding on v7x (2 TCs); no-op on
            # single-TC v5e/v6e.  Switch to pltpu.CORE_PARALLEL if a profile shows
            # the split is not taken.
            dimension_semantics=("parallel",),
            # Safe on every generation (v5e scoped default is only 16 MiB).  Raise
            # toward 64-100 MiB on v6e / <=48 MiB on v7x only if this ever binds.
            vmem_limit_bytes=32 * 1024 * 1024,
        ),
        cost_estimate=cost,
    )(x_pad, w_pad, b_pad, y_pad)

    # Tiny finalize over num_tiles scalars (grid axis stays fully parallel).
    inv_b = jnp.float32(1.0 / B)
    loss = jnp.sum(nll_part) * inv_b
    acc = jnp.sum(corr_part) * inv_b
    logits = logits_pad[:B, :n_classes]
    return logits, loss, acc


class PallasModel:
    """JAX/Pallas counterpart of bootstrap.pytorch Model (eval mode default)."""

    def __init__(self, d_in, n_classes, key):
        kw, kb = jax.random.split(key)
        # deterministic "Linear(d_in, n_classes)" init
        bound = 1.0 / float(d_in) ** 0.5
        self.weight = jax.random.uniform(
            kw, (n_classes, d_in), jnp.float32, -bound, bound)
        self.bias = jax.random.uniform(
            kb, (n_classes,), jnp.float32, -bound, bound)
        self.d_in = d_in
        self.n_classes = n_classes

        # Hoisted parameter prep (once, not per forward): transpose to (D, C),
        # pad only the class dim to a lane multiple, cast the weight to bf16 for
        # the MXU.  Padded class columns get bias = -1e30 so softmax / argmax
        # ignore them (finite sentinel -> no inf/nan through exp / 0*logit).
        c_pad = _round_up(n_classes, _LANE)
        self.w_pad = jnp.pad(
            self.weight.T, ((0, 0), (0, c_pad - n_classes))).astype(jnp.bfloat16)
        b_p = jnp.full((1, c_pad), _NEG, jnp.float32)
        self.b_pad = b_p.at[0, :n_classes].set(self.bias)

        self.mode = "eval"          # Model.__init__ calls self.eval()
        self.criterions = {"eval": True, "train": True}
        self.metrics = {"eval": True}
        # TODO(synk): cuda()/cpu()/state_dict()/load_state_dict() are framework
        # plumbing with no compute; not represented here.

    def eval(self):
        self.mode = "eval"

    def train(self):
        self.mode = "train"

    def prepare_batch(self, batch):
        # cuda_tf is a no-op on TPU; detach_tf only in eval mode.
        if self.mode == "eval":
            batch = {k: jax.lax.stop_gradient(v) for k, v in batch.items()}
        return batch

    def forward(self, batch):
        batch = self.prepare_batch(batch)

        x = batch["data"]                     # (B, D)
        y = batch["class_id"]                 # (B,)

        logits, loss, acc = _fused_forward(
            x, y, self.w_pad, self.b_pad, n_classes=self.n_classes)

        net_out = {"logits": logits}
        cri_out = {"loss": loss} if self.mode in self.criterions else {}
        met_out = {"accuracy": acc} if self.mode in self.metrics else {}

        out = {}
        out.update(net_out)
        out.update(cri_out)
        out.update(met_out)
        return out

    __call__ = forward


if __name__ == "__main__":
    key = jax.random.PRNGKey(0)
    k_model, k_data, k_label = jax.random.split(key, 3)

    B, D, C = 8, 32, 16
    model = PallasModel(d_in=D, n_classes=C, key=k_model)

    batch = {
        "data": jax.random.normal(k_data, (B, D), jnp.float32),
        "class_id": jax.random.randint(k_label, (B,), 0, C, jnp.int32),
    }

    out = model(batch)
    jax.block_until_ready(out)

    # Reference uses the same bf16 matmul inputs / f32 accumulation as the kernel
    # (intentional precision contract; not bit-identical to a pure f32 nn.Linear).
    x_bf = batch["data"].astype(jnp.bfloat16)
    w_bf = model.weight.T.astype(jnp.bfloat16)
    ref_logits = jnp.dot(x_bf, w_bf, preferred_element_type=jnp.float32) + model.bias

    assert out["logits"].shape == (B, C)
    assert out["logits"].dtype == jnp.bfloat16
    # logits are emitted in bf16 -> allow bf16 rounding on the comparison.
    assert jnp.allclose(out["logits"].astype(jnp.float32), ref_logits,
                        atol=5e-2, rtol=5e-2)

    logp = jax.nn.log_softmax(ref_logits, axis=-1)
    ref_loss = -jnp.mean(logp[jnp.arange(B), batch["class_id"]])
    assert jnp.allclose(out["loss"], ref_loss, atol=2e-3, rtol=2e-3)

    ref_acc = jnp.mean(
        (jnp.argmax(ref_logits, axis=-1) == batch["class_id"]).astype(jnp.float32))
    assert jnp.allclose(out["accuracy"], ref_acc, atol=1e-6)

    print("KERNEL_OK")
</pallas_src>

<mosaic_0001>
module attributes {stable_mosaic.version = 11 : i64} {
  func.func @_model_kernel(%arg0: i32, %arg1: memref<16x32xbf16, #tpu.memory_space<vmem>>, %arg2: memref<32x128xbf16, #tpu.memory_space<vmem>>, %arg3: memref<1x128xf32, #tpu.memory_space<vmem>>, %arg4: memref<16x1xi32, #tpu.memory_space<vmem>>, %arg5: memref<16x128xbf16, #tpu.memory_space<vmem>>, %arg6: memref<1x1xf32, #tpu.memory_space<smem>>, %arg7: memref<1x1xf32, #tpu.memory_space<smem>>) attributes {dimension_semantics = [#tpu.dimension_semantics<parallel>], iteration_bounds = array<i64: 1>, scalar_prefetch = 0 : i64, scratch_operands = 0 : i64, tpu.core_type = #tpu.core_type<tc>, window_params = [{transform_indices = @transform_0, window_bounds = array<i64: 16, 32>}, {pipeline_mode = #tpu.pipeline_mode<synchronous>, transform_indices = @transform_1, window_bounds = array<i64: 32, 128>}, {pipeline_mode = #tpu.pipeline_mode<synchronous>, transform_indices = @transform_2, window_bounds = array<i64: 1, 128>}, {transform_indices = @transform_3, window_bounds = array<i64: 16, 1>}, {transform_indices = @transform_4, window_bounds = array<i64: 16, 128>}, {transform_indices = @transform_5, window_bounds = array<i64: 1, 1>}, {transform_indices = @transform_6, window_bounds = array<i64: 1, 1>}]} {
    %c0 = arith.constant 0 : index
    %c0_0 = arith.constant 0 : index
    %0 = vector.load %arg1[%c0, %c0_0] : memref<16x32xbf16, #tpu.memory_space<vmem>>, vector<16x32xbf16>
    %c0_1 = arith.constant 0 : index
    %c0_2 = arith.constant 0 : index
    %1 = vector.load %arg4[%c0_1, %c0_2] : memref<16x1xi32, #tpu.memory_space<vmem>>, vector<16x1xi32>
    %c0_i32 = arith.constant 0 : i32
    %2 = vector.broadcast %c0_i32 : i32 to vector<16x1xi32>
    %3 = arith.cmpi sge, %1, %2 : vector<16x1xi32>
    %c0_3 = arith.constant 0 : index
    %c0_4 = arith.constant 0 : index
    %4 = vector.load %arg2[%c0_3, %c0_4] : memref<32x128xbf16, #tpu.memory_space<vmem>>, vector<32x128xbf16>
    %cst = arith.constant dense<0.000000e+00> : vector<16x128xf32>
    %5 = tpu.matmul %0, %4, %cst {dimension_numbers = #tpu.dot_dimension_numbers<[1], [0], [0], [1], [0, 0, 1, 1], [], []>} : vector<16x32xbf16>, vector<32x128xbf16>, vector<16x128xf32> -> vector<16x128xf32>
    %c0_5 = arith.constant 0 : index
    %c0_6 = arith.constant 0 : index
    %6 = vector.load %arg3[%c0_5, %c0_6] : memref<1x128xf32, #tpu.memory_space<vmem>>, vector<1x128xf32>
    %7 = vector.broadcast %6 : vector<1x128xf32> to vector<16x128xf32>
    %8 = arith.addf %5, %7 : vector<16x128xf32>
    %9 = arith.truncf %8 : vector<16x128xf32> to vector<16x128xbf16>
    %c0_7 = arith.constant 0 : index
    %c0_8 = arith.constant 0 : index
    %10 = vector.load %arg5[%c0_7, %c0_8] : memref<16x128xbf16, #tpu.memory_space<vmem>>, vector<16x128xbf16>
    tpu.vector_store %arg5[%c0_7, %c0_8], %9 {strides = array<i32>} : memref<16x128xbf16, #tpu.memory_space<vmem>>, vector<16x128xbf16>,
    %cst_9 = arith.constant dense<0xFF800000> : vector<16xf32>
    %11 = vector.multi_reduction <maximumf>, %8, %cst_9 [1] : vector<16x128xf32> to vector<16xf32>
    %12 = vector.shape_cast %11 : vector<16xf32> to vector<16x1xf32>
    %13 = vector.broadcast %12 : vector<16x1xf32> to vector<16x128xf32>
    %14 = arith.subf %8, %13 : vector<16x128xf32>
    %15 = math.exp %14 : vector<16x128xf32>
    %cst_10 = arith.constant dense<0.000000e+00> : vector<16xf32>
    %16 = vector.multi_reduction <add>, %15, %cst_10 [1] : vector<16x128xf32> to vector<16xf32>
    %17 = vector.shape_cast %16 : vector<16xf32> to vector<16x1xf32>
    %18 = math.log %17 : vector<16x1xf32>
    %19 = tpu.iota {dimensions = array<i32: 1>} : vector<16x128xi32>
    %20 = vector.broadcast %1 : vector<16x1xi32> to vector<16x128xi32>
    %21 = arith.cmpi eq, %19, %20 : vector<16x128xi32>
    %22 = arith.extui %21 : vector<16x128xi1> to vector<16x128xi32>
    %23 = arith.sitofp %22 : vector<16x128xi32> to vector<16x128xf32>
    %24 = arith.mulf %23, %8 : vector<16x128xf32>
    %cst_11 = arith.constant dense<0.000000e+00> : vector<16xf32>
    %25 = vector.multi_reduction <add>, %24, %cst_11 [1] : vector<16x128xf32> to vector<16xf32>
    %26 = vector.shape_cast %25 : vector<16xf32> to vector<16x1xf32>
    %27 = arith.addf %12, %18 : vector<16x1xf32>
    %28 = arith.subf %27, %26 : vector<16x1xf32>
    %cst_12 = arith.constant 0.000000e+00 : f32
    %29 = vector.broadcast %cst_12 : f32 to vector<16x1xf32>
    %30 = arith.select %3, %28, %29 : vector<16x1xi1>, vector<16x1xf32>
    %31 = vector.shape_cast %30 : vector<16x1xf32> to vector<1x16x1xf32>
    %cst_13 = arith.constant dense<0.000000e+00> : vector<1xf32>
    %32 = vector.multi_reduction <add>, %31, %cst_13 [1, 2] : vector<1x16x1xf32> to vector<1xf32>
    %33 = vector.shape_cast %32 : vector<1xf32> to vector<1x1x1xf32>
    %34 = vector.extract %33[0, 0, 0] : f32 from vector<1x1x1xf32>
    %c0_14 = arith.constant 0 : index
    %c0_15 = arith.constant 0 : index
    %35 = memref.load %arg6[%c0_14, %c0_15] : memref<1x1xf32, #tpu.memory_space<smem>>
    memref.store %34, %arg6[%c0_14, %c0_15] : memref<1x1xf32, #tpu.memory_space<smem>>
    %36 = vector.broadcast %12 : vector<16x1xf32> to vector<16x128xf32>
    %37 = arith.cmpf oeq, %8, %36 : vector<16x128xf32>
    %c128_i32 = arith.constant 128 : i32
    %38 = vector.broadcast %c128_i32 : i32 to vector<16x128xi32>
    %39 = arith.select %37, %19, %38 : vector<16x128xi1>, vector<16x128xi32>
    %cst_16 = arith.constant dense<2147483647> : vector<16xi32>
    %40 = vector.multi_reduction <minsi>, %39, %cst_16 [1] : vector<16x128xi32> to vector<16xi32>
    %41 = vector.shape_cast %40 : vector<16xi32> to vector<16x1xi32>
    %42 = arith.cmpi eq, %41, %1 : vector<16x1xi32>
    %43 = arith.extui %42 : vector<16x1xi1> to vector<16x1xi32>
    %44 = arith.sitofp %43 : vector<16x1xi32> to vector<16x1xf32>
    %45 = vector.shape_cast %44 : vector<16x1xf32> to vector<1x16x1xf32>
    %cst_17 = arith.constant dense<0.000000e+00> : vector<1xf32>
    %46 = vector.multi_reduction <add>, %45, %cst_17 [1, 2] : vector<1x16x1xf32> to vector<1xf32>
    %47 = vector.shape_cast %46 : vector<1xf32> to vector<1x1x1xf32>
    %48 = vector.extract %47[0, 0, 0] : f32 from vector<1x1x1xf32>
    %c0_18 = arith.constant 0 : index
    %c0_19 = arith.constant 0 : index
    %49 = memref.load %arg7[%c0_18, %c0_19] : memref<1x1xf32, #tpu.memory_space<smem>>
    memref.store %48, %arg7[%c0_18, %c0_19] : memref<1x1xf32, #tpu.memory_space<smem>>
    return
  }
  func.func @transform_0(%arg0: i32) -> (i32, i32) {
    %c0_i32 = arith.constant 0 : i32
    %c0_i32_0 = arith.constant 0 : i32
    return %arg0, %c0_i32 : i32, i32
  }
  func.func @transform_1(%arg0: i32) -> (i32, i32) {
    %c0_i32 = arith.constant 0 : i32
    %c0_i32_0 = arith.constant 0 : i32
    %c0_i32_1 = arith.constant 0 : i32
    return %c0_i32, %c0_i32_0 : i32, i32
  }
  func.func @transform_2(%arg0: i32) -> (i32, i32) {
    %c0_i32 = arith.constant 0 : i32
    %c0_i32_0 = arith.constant 0 : i32
    %c0_i32_1 = arith.constant 0 : i32
    return %c0_i32, %c0_i32_0 : i32, i32
  }
  func.func @transform_3(%arg0: i32) -> (i32, i32) {
    %c0_i32 = arith.constant 0 : i32
    %c0_i32_0 = arith.constant 0 : i32
    return %arg0, %c0_i32 : i32, i32
  }
  func.func @transform_4(%arg0: i32) -> (i32, i32) {
    %c0_i32 = arith.constant 0 : i32
    %c0_i32_0 = arith.constant 0 : i32
    return %arg0, %c0_i32 : i32, i32
  }
  func.func @transform_5(%arg0: i32) -> (i32, i32) {
    %c0_i32 = arith.constant 0 : i32
    %c0_i32_0 = arith.constant 0 : i32
    return %arg0, %c0_i32 : i32, i32
  }
  func.func @transform_6(%arg0: i32) -> (i32, i32) {
    %c0_i32 = arith.constant 0 : i32
    %c0_i32_0 = arith.constant 0 : i32
    return %arg0, %c0_i32 : i32, i32
  }
}

</mosaic_0001>

<llo_original>
// kernel: _fused_forward.1
$region0: #{_fused_forward.1}
  #allocation0 [shape = 'u32[]', space=smem, size = 0x4, offset = 0x4, fixed_abs, tag = 'smem constant byte address 0x4 - core index']
  #allocation1 [shape = 'u32[72,128]{1,0:T(1,128)}', space=vmem, size = 0x9000, scoped, tag = 'internal scratch']
  %s0 = inlined_call_operand.vmem [shape: bf16[16,32], index: 0, kind: input, shape index: {}]
  %s1 = inlined_call_operand.vmem [shape: bf16[32,128], index: 1, kind: input, shape index: {}]
  %s2 = inlined_call_operand.vmem [shape: f32[1,128], index: 2, kind: input, shape index: {}]
  %s3 = inlined_call_operand.vmem [shape: s32[16,1], index: 3, kind: input, shape index: {}]
  %s4 = inlined_call_operand.vmem [shape: bf16[16,128], index: 4, kind: output, shape index: {0}]
  %s5 = inlined_call_operand.hbm [shape: f32[1,1], index: 5, kind: output, shape index: {1}]
  %s6 = inlined_call_operand.hbm [shape: f32[1,1], index: 6, kind: output, shape index: {2}]
  %7 = xla_tuple %s4, %s5, %s6
  %s8 = sld [smem:[#allocation0]]
  $region42: #{_fused_forward.1} parent=0
    _
  %s10 = ssub.s32 1, %s8
  %s11 = scalar_select 0, %s10, %s8
  $region1: #{_fused_forward.1} parent=0
    #allocation2 [shape = 'u8[512]{0}', space=smem, size = 0x200, scoped, tag = 'output window, operand 1, single buffered']
    #allocation3 [shape = 's32[1]{0}', space=sflag, size = 0x4, scoped, tag = 'scoped memory for _fused_forward.1']
    #allocation4 [shape = 'u8[512]{0}', space=smem, size = 0x200, scoped, tag = 'output window, operand 2, single buffered']
    #allocation5 [shape = 's32[1]{0}', space=sflag, size = 0x4, scoped, tag = 'scoped memory for _fused_forward.1']
    %12 = vsyncpa [#allocation3], 0
    %13 = vsyncpa [#allocation5], 0
    // Predicated region
    $region2: #{_fused_forward.1} parent=1 // pred_check
      _
    $region3: #{_fused_forward.1} parent=1 // pred_check_branch
      %15 = sbr.rel (0) target = $region5
    $region4: #{_fused_forward.1} parent=1 // pred_region
      _
    $region5: #{_fused_forward.1} parent=1 // pred_fallthru
      _
    // Predicated region
    $region6: #{_fused_forward.1} parent=1 // pred_check
      _
    $region7: #{_fused_forward.1} parent=1 // pred_check_branch
      %17 = sbr.rel (0) target = $region9
    $region8: #{_fused_forward.1} parent=1 // pred_region
      _
    $region9: #{_fused_forward.1} parent=1 // pred_fallthru
      _
    // Predicated region
    $region10: #{_fused_forward.1} parent=1 // pred_check
      _
    $region11: #{_fused_forward.1} parent=1 // pred_check_branch
      %19 = sbr.rel (0) target = $region13
    $region12: #{_fused_forward.1} parent=1 // pred_region
      _
    $region13: #{_fused_forward.1} parent=1 // pred_fallthru
      _
    // Predicated region
    $region14: #{_fused_forward.1} parent=1 // pred_check
      _
    $region15: #{_fused_forward.1} parent=1 // pred_check_branch
      %21 = sbr.rel (0) target = $region17
    $region16: #{_fused_forward.1} parent=1 // pred_region
      _
    $region17: #{_fused_forward.1} parent=1 // pred_fallthru
      _
    %v23 = vld [vmem:[%s0] sm:$0xf]
    %v24 = vld [vmem:[%s0 + $0x4] sm:$0xf]
    %v25 = vld [vmem:[%s3] sm:$0xff]
    %v26 = vld [vmem:[%s3 + $0x8] sm:$0xff]
    %vm27 = vcmp.ge.s32.totalorder %v25, 0
    %vm28 = vcmp.ge.s32.totalorder %v26, 0
    %v29 = vld [vmem:[%s1] sm:$0xf]
    %v30 = vld [vmem:[%s1 + $0x4] sm:$0xf]
    %v31 = vld [vmem:[%s1 + $0x8] sm:$0xf]
    %v32 = vld [vmem:[%s1 + $0xc] sm:$0xf]
    %v33 = vld [vmem:[%s2] sm:$0x1]
    %v35 = vperm.slane %v33, 0
    %v39 = vunpack.c.l.b16 %v23
    %v40 = vunpack.c.l.b16 %v24
    %v41 = vpack.c.b16 %v40, %v39
    %v46 = vunpack.c.l.b16 %v29
    %v47 = vunpack.c.l.b16 %v30
    %v48 = vunpack.c.l.b16 %v31
    %v49 = vunpack.c.l.b16 %v32
    %v50 = vpack.c.b16 %v47, %v46
    %v51 = vpack.c.b16 %v49, %v48
    %vm54 = vcmask 261120
    %v56 = vsel %vm54, %v41, 0
    %58 = vmatpush.bf16.msra.mxu0 0
    %59 = vmatpush.bf16.msra.mxu0 0
    %60 = vmatpush.bf16.msra.mxu0 0
    %61 = vmatpush.bf16.msra.mxu0 0
    %62 = vmatpush.bf16.msra.mxu0 0
    %63 = vmatpush.bf16.msra.mxu0 0
    %64 = vmatpush.bf16.msra.mxu0 %v51
    %65 = vmatpush.bf16.msra.mxu0 %v50
    %66 = vmatmul.bf16.gmra.mxu0 %v56
    %v67 = vpop.f32.mrf.mxu0
    %v68 = vadd.f32 %v35, %v67
    %v69 = vpop.f32.mrf.mxu0
    %v70 = vadd.f32 %v35, %v69
    %71 = vdwg.mxu0
    %v72 = vpack.c.bf16 %v68, %v68
    %v73 = vpack.c.bf16 %v70, %v70
    %74 = vst [vmem:[%s4] sm:$0xf] %v72
    %75 = vst [vmem:[%s4 + $0x4] sm:$0xf] %v73
    %76 = vmax.xlane.f32.xlu0 %v68
    %v77 = vpop.xlane.xlu0 %76
    %78 = vmax.xlane.f32.xlu0 %v70
    %v79 = vpop.xlane.xlu0 %78
    %v80 = vsub.f32 %v68, %v77
    %v81 = vsub.f32 %v70, %v79
    %v82 = vmul.f32 %v80, 1.442695
    %v83 = vpow.pop %v82
    %v84 = vmul.f32 %v81, 1.442695
    %v85 = vpow.pop %v84
    %86 = vadd.xlane.f32.xlu0 %v83
    %v87 = vpop.xlane.xlu0 %86
    %88 = vadd.xlane.f32.xlu0 %v85
    %v89 = vpop.xlane.xlu0 %88
    %v90 = vlog2.pop %v87
    %v91 = vmul.f32 %v90, 0.6931472
    %v92 = vlog2.pop %v89
    %v93 = vmul.f32 %v92, 0.6931472
    %v94 = vlaneseq
    %v95 = vand.u32 %v94, 127
    %96 = vset.pattern.permute.xlu0 0
    %97 = vperm.xlu0 %96, %v25
    %v98 = vpop.permute.xlu0 %97
    %99 = vset.pattern.permute.xlu0 0
    %100 = vperm.xlu0 %99, %v26
    %v101 = vpop.permute.xlu0 %100
    %vm102 = vcmp.eq.s32.totalorder %v95, %v98
    %vm103 = vcmp.eq.s32.totalorder %v95, %v101
    %v104 = vsel %vm102, 1, 0
    %v105 = vsel %vm103, 1, 0
    %v106 = vcvt.s32.f32 %v104
    %v107 = vcvt.s32.f32 %v105
    %v108 = vmul.f32 %v106, %v68
    %v109 = vmul.f32 %v107, %v70
    %110 = vadd.xlane.f32.xlu0 %v108
    %v111 = vpop.xlane.xlu0 %110
    %112 = vadd.xlane.f32.xlu0 %v109
    %v113 = vpop.xlane.xlu0 %112
    %v114 = vadd.f32 %v77, %v91
    %v115 = vadd.f32 %v79, %v93
    %v116 = vsub.f32 %v114, %v111
    %v117 = vsub.f32 %v115, %v113
    %v118 = vsel %vm27, %v116, 0.0
    %v119 = vsel %vm28, %v117, 0.0
    %vm120 = vcmask 7168
    %v121 = vsel %vm120, %v118, 0.0
    %v122 = vsel %vm120, %v119, 0.0
    %v123 = vadd.f32 %v121, %v122
    %124 = vadd.xlane.f32.xlu0 %v123
    %v125 = vpop.xlane.xlu0 %124
    %v126 = vrot.slane %v125, 4
    %v127 = vadd.f32 %v125, %v126
    %v128 = vrot.slane %v127, 2
    %v129 = vadd.f32 %v127, %v128
    %v130 = vrot.slane %v129, 1
    %v131 = vadd.f32 %v129, %v130
    %s132 = vtos %v131
    %s133 = scalar_lea.smem [#allocation2], 0
    %134 = sst [smem:[%s133]] %s132
    %vm135 = vcmp.eq.f32.partialorder %v68, %v77
    %vm136 = vcmp.eq.f32.partialorder %v70, %v79
    %v137 = vsel %vm135, %v95, 128
    %v138 = vsel %vm136, %v95, 128
    %v139 = vand.u32 %v137, 65535
    %v140 = vshra.s32 %v137, 16
    %v141 = vcvt.s32.f32 %v139
    %v142 = vcvt.s32.f32 %v140
    %143 = vmin.xlane.f32.xlu0 %v142
    %v144 = vpop.xlane.xlu0 %143
    %vm145 = vcmp.eq.f32.partialorder %v142, %v144
    %v146 = vsel %vm145, %v141, inf
    %147 = vmin.xlane.f32.xlu0 %v146
    %v148 = vpop.xlane.xlu0 %147
    %v149 = vcvt.f32.s32 %v148
    %v150 = vcvt.f32.s32 %v144
    %v151 = vshll.u32 %v150, 16
    %v152 = vadd.s32 %v151, %v149
    %v153 = vand.u32 %v138, 65535
    %v154 = vshra.s32 %v138, 16
    %v155 = vcvt.s32.f32 %v153
    %v156 = vcvt.s32.f32 %v154
    %157 = vmin.xlane.f32.xlu0 %v156
    %v158 = vpop.xlane.xlu0 %157
    %vm159 = vcmp.eq.f32.partialorder %v156, %v158
    %v160 = vsel %vm159, %v155, inf
    %161 = vmin.xlane.f32.xlu0 %v160
    %v162 = vpop.xlane.xlu0 %161
    %v163 = vcvt.f32.s32 %v162
    %v164 = vcvt.f32.s32 %v158
    %v165 = vshll.u32 %v164, 16
    %v166 = vadd.s32 %v165, %v163
    %vm167 = vcmp.eq.s32.totalorder %v152, %v25
    %vm168 = vcmp.eq.s32.totalorder %v166, %v26
    %v169 = vsel %vm167, 1, 0
    %v170 = vsel %vm168, 1, 0
    %v171 = vcvt.s32.f32 %v169
    %v172 = vcvt.s32.f32 %v170
    %v173 = vsel %vm120, %v171, 0.0
    %v174 = vsel %vm120, %v172, 0.0
    %v175 = vadd.f32 %v173, %v174
    %176 = vadd.xlane.f32.xlu0 %v175
    %v177 = vpop.xlane.xlu0 %176
    %v178 = vrot.slane %v177, 4
    %v179 = vadd.f32 %v177, %v178
    %v180 = vrot.slane %v179, 2
    %v181 = vadd.f32 %v179, %v180
    %v182 = vrot.slane %v181, 1
    %v183 = vadd.f32 %v181, %v182
    %s184 = vtos %v183
    %s185 = scalar_lea.smem [#allocation4], 0
    %186 = sst [smem:[%s185]] %s184
    // Predicated region
    $region18: #{_fused_forward.1} parent=1 // pred_check
      _
    $region19: #{_fused_forward.1} parent=1 // pred_check_branch
      %188 = sbr.rel (0) target = $region21
    $region20: #{_fused_forward.1} parent=1 // pred_region
      _
    $region21: #{_fused_forward.1} parent=1 // pred_fallthru
      _
    // Predicated region
    $region22: #{_fused_forward.1} parent=1 // pred_check
      _
    $region23: #{_fused_forward.1} parent=1 // pred_check_branch
      %190 = sbr.rel (0) target = $region25
    $region24: #{_fused_forward.1} parent=1 // pred_region
      %192 = vsyncadd [#allocation3], 0
      %s194 = sshll.u32 %s5, 4
      %s195 = int_to_ptr.hbm [resolvable:$true] %s194
      %197 = dma.smem_to_hbm [#allocation2], 16, %s195, [#allocation3]
    $region25: #{_fused_forward.1} parent=1 // pred_fallthru
      _
    // Predicated region
    $region26: #{_fused_forward.1} parent=1 // pred_check
      _
    $region27: #{_fused_forward.1} parent=1 // pred_check_branch
      %199 = sbr.rel (0) target = $region29
    $region28: #{_fused_forward.1} parent=1 // pred_region
      %201 = vsyncadd [#allocation5], 0
      %s203 = sshll.u32 %s6, 4
      %s204 = int_to_ptr.hbm [resolvable:$true] %s203
      %206 = dma.smem_to_hbm [#allocation4], 16, %s204, [#allocation5]
    $region29: #{_fused_forward.1} parent=1 // pred_fallthru
      _
    // Predicated region
    $region30: #{_fused_forward.1} parent=1 // pred_check
      _
    $region31: #{_fused_forward.1} parent=1 // pred_check_branch
      %208 = sbr.rel (0) target = $region33
    $region32: #{_fused_forward.1} parent=1 // pred_region
      _
    $region33: #{_fused_forward.1} parent=1 // pred_fallthru
      _
    // Predicated region
    $region34: #{_fused_forward.1} parent=1 // pred_check
      _
    $region35: #{_fused_forward.1} parent=1 // pred_check_branch
      %210 = sbr.rel (0) target = $region37
    $region36: #{_fused_forward.1} parent=1 // pred_region
      %212 = dma.done [#allocation3], 16
    $region37: #{_fused_forward.1} parent=1 // pred_fallthru
      _
    // Predicated region
    $region38: #{_fused_forward.1} parent=1 // pred_check
      _
    $region39: #{_fused_forward.1} parent=1 // pred_check_branch
      %214 = sbr.rel (0) target = $region41
    $region40: #{_fused_forward.1} parent=1 // pred_region
      %216 = dma.done [#allocation5], 16
    $region41: #{_fused_forward.1} parent=1 // pred_fallthru
      _
    %217 = sfence
    %218 = vsyncpa [#allocation3], 1
    %219 = vsyncpa [#allocation5], 1

</llo_original>
